<compile_context>
chip_gen: v6e
topology: v6e:2x2x1
jax: 0.10.0
libtpu: 0.0.40
codegen_flags: <defaults>
</compile_context>

<pallas_src>
import functools
import math

import jax
import jax.numpy as jnp
from jax.experimental import pallas as pl
from jax.experimental.pallas import tpu as pltpu


_TK_MAX = 1024   # K-tile cap: (1, TK) f32 x-row + (TK, TN) bf16 W tile stay small
_TN_MAX = 512    # N-tile cap: bf16 W tile = 1 MiB -> 2 MiB double-buffered,
                 # well under scoped-VMEM defaults (16 MiB v5e, 32 MiB v6e/v7x)


def _round_up(x, m):
    return ((x + m - 1) // m) * m


def _pick_tile(dim, max_tile):
    """Largest multiple of 128 <= max_tile that divides round_up(dim, 128)."""
    padded = _round_up(dim, 128)
    tile = max(128, (min(max_tile, padded) // 128) * 128)
    while padded % tile:
        tile -= 128
    return tile, padded


def _linear_kernel(x_ref, w_ref, b_ref, o_ref, acc_ref):
    # x_ref: (1, TK) f32, w_ref: (TK, TN) bf16, b_ref/o_ref/acc_ref: (1, TN) f32.
    k = pl.program_id(1)

    @pl.when(k == 0)
    def _():
        acc_ref[...] = jnp.zeros_like(acc_ref)

    acc_ref[...] += jnp.dot(
        x_ref[...],
        w_ref[...].astype(jnp.float32),
        preferred_element_type=jnp.float32,
    )

    @pl.when(k == pl.num_programs(1) - 1)
    def _():
        o_ref[...] = (acc_ref[...] + b_ref[...]).astype(o_ref.dtype)


def prepare_params(weights, bias):
    """One-time prep (outside the hot path): pad to tile multiples, cast W->bf16."""
    in_dim, out_dim = weights.shape
    tk, in_pad = _pick_tile(in_dim, _TK_MAX)
    tn, out_pad = _pick_tile(out_dim, _TN_MAX)
    w_padded = (
        jnp.zeros((in_pad, out_pad), jnp.float32)
        .at[:in_dim, :out_dim].set(weights.astype(jnp.float32))
        .astype(jnp.bfloat16)
    )
    b_padded = (
        jnp.zeros((1, out_pad), jnp.float32)
        .at[0, :out_dim].set(bias.astype(jnp.float32))
    )
    dims = (in_dim, out_dim, in_pad, out_pad, tk, tn)
    return w_padded, b_padded, dims


@functools.partial(jax.jit, static_argnames=("dims",))
def linear_model_forward(x, w_padded, b_padded, dims):
    """Equivalent of LinearModel.forward: torch.mm(x.view(1,-1), W) + b."""
    in_dim, out_dim, in_pad, out_pad, tk, tn = dims
    x_row = x.reshape(1, -1).astype(jnp.float32)
    x_row = jnp.zeros((1, in_pad), jnp.float32).at[:, :in_dim].set(x_row)

    grid = (out_pad // tn, in_pad // tk)   # N first (parallel), reduction K last

    out = pl.pallas_call(
        _linear_kernel,
        out_shape=jax.ShapeDtypeStruct((1, out_pad), jnp.float32),
        grid=grid,
        in_specs=[
            pl.BlockSpec((1, tk), lambda n, k: (0, k)),    # x row chunk
            pl.BlockSpec((tk, tn), lambda n, k: (k, n)),   # streamed bf16 W tile
            pl.BlockSpec((1, tn), lambda n, k: (0, n)),    # bias tile
        ],
        out_specs=pl.BlockSpec((1, tn), lambda n, k: (0, n)),
        scratch_shapes=[pltpu.VMEM((1, tn), jnp.float32)],
        compiler_params=pltpu.CompilerParams(
            dimension_semantics=("parallel", "arbitrary"),  # N sharded on v7x megacore
            vmem_limit_bytes=32 * 1024 * 1024,
        ),
        cost_estimate=pl.CostEstimate(
            flops=2 * in_pad * out_pad,
            transcendentals=0,
            bytes_accessed=(in_pad * out_pad * 2            # bf16 W (dominant)
                            + in_pad * 4                    # x row
                            + out_pad * 4 * 2),             # bias + output
        ),
    )(x_row, w_padded, b_padded)
    return out[:, :out_dim]


def init_params(key, in_dim, out_dim):
    """Deterministic init matching the PyTorch module:
    xavier_uniform_ for weights, zeros_ for bias."""
    bound = math.sqrt(6.0 / (in_dim + out_dim))
    weights = jax.random.uniform(
        key, (in_dim, out_dim), dtype=jnp.float32, minval=-bound, maxval=bound
    )
    bias = jnp.zeros((out_dim,), dtype=jnp.float32)
    return weights, bias


if __name__ == "__main__":
    key = jax.random.PRNGKey(0)
    k_x, k_w = jax.random.split(key)

    # Input (2, 4, 16, 16) -> flattened row of in_dim = 2048.
    # out_dim = 576 is deliberately NOT a multiple of 128 to exercise the
    # padding / slice-back path; grid becomes (5 N-tiles, 2 K-tiles).
    x = jax.random.normal(k_x, (2, 4, 16, 16), dtype=jnp.float32)
    in_dim = x.size
    out_dim = 576

    weights, bias = init_params(k_w, in_dim, out_dim)
    w_padded, b_padded, dims = prepare_params(weights, bias)   # one-time prep

    out = linear_model_forward(x, w_padded, b_padded, dims)
    out = jax.block_until_ready(out)

    # Reference in plain JAX, using the same bf16-quantized weights in f32 math.
    w_eff = w_padded[:in_dim, :out_dim].astype(jnp.float32)
    ref = x.reshape(1, -1).astype(jnp.float32) @ w_eff + bias[None, :]

    assert out.shape == (1, out_dim)
    assert jnp.allclose(out, ref, atol=1e-4, rtol=1e-4), float(
        jnp.max(jnp.abs(out - ref))
    )

    print("KERNEL_OK")
</pallas_src>

<mosaic_0001>
module attributes {stable_mosaic.version = 11 : i64} {
  func.func @_linear_kernel(%arg0: i32, %arg1: i32, %arg2: memref<1x1024xf32, #tpu.memory_space<vmem>>, %arg3: memref<1024x128xbf16, #tpu.memory_space<vmem>>, %arg4: memref<1x128xf32, #tpu.memory_space<vmem>>, %arg5: memref<1x128xf32, #tpu.memory_space<vmem>>, %arg6: memref<1x128xf32, #tpu.memory_space<vmem>>) attributes {dimension_semantics = [#tpu.dimension_semantics<parallel>, #tpu.dimension_semantics<arbitrary>], iteration_bounds = array<i64: 5, 2>, scalar_prefetch = 0 : i64, scratch_operands = 1 : i64, tpu.core_type = #tpu.core_type<tc>, window_params = [{transform_indices = @transform_0, window_bounds = array<i64: 1, 1024>}, {transform_indices = @transform_1, window_bounds = array<i64: 1024, 128>}, {transform_indices = @transform_2, window_bounds = array<i64: 1, 128>}, {transform_indices = @transform_3, window_bounds = array<i64: 1, 128>}]} {
    %c0_i32 = arith.constant 0 : i32
    %0 = arith.cmpi eq, %arg1, %c0_i32 : i32
    %1 = arith.extui %0 : i1 to i32
    %c0_i32_0 = arith.constant 0 : i32
    %2 = arith.cmpi ne, %1, %c0_i32_0 : i32
    scf.if %2 {
      %cst_9 = arith.constant 0.000000e+00 : f32
      %13 = vector.broadcast %cst_9 : f32 to vector<1x128xf32>
      %c0_10 = arith.constant 0 : index
      %c0_11 = arith.constant 0 : index
      %14 = vector.load %arg6[%c0_10, %c0_11] : memref<1x128xf32, #tpu.memory_space<vmem>>, vector<1x128xf32>
      tpu.vector_store %arg6[%c0_10, %c0_11], %13 {strides = array<i32>} : memref<1x128xf32, #tpu.memory_space<vmem>>, vector<1x128xf32>,
    } else {
    }
    %c0 = arith.constant 0 : index
    %c0_1 = arith.constant 0 : index
    %3 = vector.load %arg6[%c0, %c0_1] : memref<1x128xf32, #tpu.memory_space<vmem>>, vector<1x128xf32>
    %c0_2 = arith.constant 0 : index
    %c0_3 = arith.constant 0 : index
    %4 = vector.load %arg2[%c0_2, %c0_3] : memref<1x1024xf32, #tpu.memory_space<vmem>>, vector<1x1024xf32>
    %c0_4 = arith.constant 0 : index
    %c0_5 = arith.constant 0 : index
    %5 = vector.load %arg3[%c0_4, %c0_5] : memref<1024x128xbf16, #tpu.memory_space<vmem>>, vector<1024x128xbf16>
    %6 = arith.extf %5 : vector<1024x128xbf16> to vector<1024x128xf32>
    %cst = arith.constant dense<0.000000e+00> : vector<1x128xf32>
    %7 = tpu.matmul %4, %6, %cst {dimension_numbers = #tpu.dot_dimension_numbers<[1], [0], [0], [1], [0, 0, 1, 1], [], []>} : vector<1x1024xf32>, vector<1024x128xf32>, vector<1x128xf32> -> vector<1x128xf32>
    %8 = arith.addf %3, %7 : vector<1x128xf32>
    %c0_6 = arith.constant 0 : index
    %c0_7 = arith.constant 0 : index
    %9 = vector.load %arg6[%c0_6, %c0_7] : memref<1x128xf32, #tpu.memory_space<vmem>>, vector<1x128xf32>
    tpu.vector_store %arg6[%c0_6, %c0_7], %8 {strides = array<i32>} : memref<1x128xf32, #tpu.memory_space<vmem>>, vector<1x128xf32>,
    %c1_i32 = arith.constant 1 : i32
    %10 = arith.cmpi eq, %arg1, %c1_i32 : i32
    %11 = arith.extui %10 : i1 to i32
    %c0_i32_8 = arith.constant 0 : i32
    %12 = arith.cmpi ne, %11, %c0_i32_8 : i32
    scf.if %12 {
      %c0_9 = arith.constant 0 : index
      %c0_10 = arith.constant 0 : index
      %13 = vector.load %arg6[%c0_9, %c0_10] : memref<1x128xf32, #tpu.memory_space<vmem>>, vector<1x128xf32>
      %c0_11 = arith.constant 0 : index
      %c0_12 = arith.constant 0 : index
      %14 = vector.load %arg4[%c0_11, %c0_12] : memref<1x128xf32, #tpu.memory_space<vmem>>, vector<1x128xf32>
      %15 = arith.addf %13, %14 : vector<1x128xf32>
      %c0_13 = arith.constant 0 : index
      %c0_14 = arith.constant 0 : index
      %16 = vector.load %arg5[%c0_13, %c0_14] : memref<1x128xf32, #tpu.memory_space<vmem>>, vector<1x128xf32>
      tpu.vector_store %arg5[%c0_13, %c0_14], %15 {strides = array<i32>} : memref<1x128xf32, #tpu.memory_space<vmem>>, vector<1x128xf32>,
    } else {
    }
    return
  }
  func.func @transform_0(%arg0: i32, %arg1: i32) -> (i32, i32) {
    %c0_i32 = arith.constant 0 : i32
    %c0_i32_0 = arith.constant 0 : i32
    return %c0_i32, %arg1 : i32, i32
  }
  func.func @transform_1(%arg0: i32, %arg1: i32) -> (i32, i32) {
    %c0_i32 = arith.constant 0 : i32
    return %arg1, %arg0 : i32, i32
  }
  func.func @transform_2(%arg0: i32, %arg1: i32) -> (i32, i32) {
    %c0_i32 = arith.constant 0 : i32
    %c0_i32_0 = arith.constant 0 : i32
    return %c0_i32, %arg0 : i32, i32
  }
  func.func @transform_3(%arg0: i32, %arg1: i32) -> (i32, i32) {
    %c0_i32 = arith.constant 0 : i32
    %c0_i32_0 = arith.constant 0 : i32
    return %c0_i32, %arg0 : i32, i32
  }
}

</mosaic_0001>

<llo_original>
// kernel: linear_model_forward.1
$region0: #{linear_model_forward.1}
  #allocation0 [shape = 'u32[]', space=smem, size = 0x4, offset = 0x4, fixed_abs, tag = 'smem constant byte address 0x4 - core index']
  #allocation1 [shape = 'u32[144,128]{1,0:T(1,128)}', space=vmem, size = 0x12000, scoped, tag = 'internal scratch']
  #allocation2 [shape = 'f32[1,128]{1,0:T(1,128)}', space=vmem, size = 0x200, scoped, tag = 'scratch operand']
  %s0 = inlined_call_operand.vmem [shape: f32[1,2048], index: 0, kind: input, shape index: {}]
  %s1 = inlined_call_operand.hbm [shape: bf16[2048,640], index: 1, kind: input, shape index: {}]
  %s2 = inlined_call_operand.hbm [shape: f32[1,640], index: 2, kind: input, shape index: {}]
  %s3 = inlined_call_operand.hbm [shape: f32[1,640], index: 3, kind: output, shape index: {}]
  %s4 = sld [smem:[#allocation0]]
  $region61: #{linear_model_forward.1} parent=0
    _
  %s6 = ssub.s32 1, %s4
  %s7 = scalar_select 0, %s6, %s4
  $region1: #{linear_model_forward.1} parent=0
    #allocation3 [shape = 'u8[524288]{0}', space=vmem, size = 0x80000, scoped, tag = 'input window, operand 1']
    #allocation4 [shape = 's32[2]{0}', space=sflag, size = 0x8, scoped, tag = 'scoped memory for linear_model_forward.1']
    #allocation5 [shape = 's32[2]{0}', space=sflag, size = 0x8, scoped, tag = 'scoped memory for linear_model_forward.1']
    #allocation6 [shape = 'u8[1024]{0}', space=vmem, size = 0x400, scoped, tag = 'input window, operand 2']
    #allocation7 [shape = 's32[2]{0}', space=sflag, size = 0x8, scoped, tag = 'scoped memory for linear_model_forward.1']
    #allocation8 [shape = 'u8[1024]{0}', space=vmem, size = 0x400, scoped, tag = 'output window, operand 0']
    %8 = vsyncpa [#allocation4], 0
    %s9 = scalar_lea.sflag [#allocation4], 1
    %10 = vsyncpa %s9, 0
    %11 = vsyncpa [#allocation7], 0
    %s12 = scalar_lea.sflag [#allocation7], 1
    %13 = vsyncpa %s12, 0
    %14 = vsyncpa [#allocation5], 0
    %s15 = scalar_lea.sflag [#allocation5], 1
    %16 = vsyncpa %s15, 0
    loop: start=0, step=1, limit=12
    $region2: #{linear_model_forward.1} parent=1 // loop_pre_header
      _
    $region3: #{linear_model_forward.1} parent=1 // loop_header
      %s18 = sphi 0, %s22
      %p19 = scmp.ge.s32.totalorder %s18, 12
      %s25 = sphi 0, %s37
      %s26 = sphi 0, %s33
      %s27 = sphi 0, %s25
      %s28 = sphi 0, %s26
      %s29 = sphi 0, %s27
      %s30 = sphi 0, %s28
      %s40 = sphi 0, %s42
      %s43 = sphi 0, %s40
      %s44 = sphi 0, %s43
      %s60 = sphi 0, %s44
      %s68 = sphi 0, %s70
      %s71 = sphi 0, %s68
      %s72 = sphi 0, %s71
      %s88 = sphi 0, %s72
      %s94 = sphi 0, %s96
      %s97 = sphi 0, %s94
      %s98 = sphi 0, %s97
      %s114 = sphi 0, %s98
      %s120 = sphi 0, %s122
      %s123 = sphi 0, %s120
      %s124 = sphi 0, %s123
      %s140 = sphi 0, %s124
    $region4: #{linear_model_forward.1} parent=1 // loop_header_branch
      %21 = sbr.rel (%p19) target = $region8
    $region5: #{linear_model_forward.1} parent=1 // loop_body
      %s23 = ssub.s32 %s18, 1
      %s24 = ssub.s32 %s18, 2
      %s31 = sadd.s32 1, %s26
      %p32 = scmp.ge.s32.totalorder %s31, 2
      %s33 = scalar_select %p32, 0, %s31
      %s34 = sadd.s32 1, %s25
      %s35 = scalar_select %p32, %s34, %s25
      %p36 = scmp.ge.s32.totalorder %s35, 5
      %s37 = scalar_select %p36, 0, %s35
      %s38 = ssub.s32 %s26, %s33
      %p39 = scmp.eq.s32.totalorder %s38, 0
      %s41 = sadd.s32 %s40, 1
      %s42 = scalar_select %p39, %s40, %s41
      %p45 = pneg %p39
      %p46 = scmp.eq.s32.totalorder %s18, 9
      %p47 = por %p45, %p46
      %p48 = scmp.ne.s32.totalorder %s40, %s43
      %p49 = scmp.eq.s32.totalorder %s18, 0
      %p50 = por %p48, %p49
      %p51 = scmp.ne.s32.totalorder %s40, %s43
      %p52 = scmp.eq.s32.totalorder %s23, 9
      %p53 = por %p51, %p52
      %p54 = scmp.ne.s32.totalorder %s43, %s44
      %p55 = scmp.eq.s32.totalorder %s23, 0
      %p56 = por %p54, %p55
      %p57 = scmp.ne.s32.totalorder %s43, %s44
      %p58 = scmp.eq.s32.totalorder %s24, 9
      %p59 = por %p57, %p58
      %p61 = scmp.ne.s32.totalorder %s44, %s60
      %p62 = scmp.eq.s32.totalorder %s24, 0
      %p63 = por %p61, %p62
      %s64 = ssub.s32 %s26, %s33
      %s65 = ssub.s32 %s25, %s37
      %s66 = sor.u32 %s64, %s65
      %p67 = scmp.eq.s32.totalorder %s66, 0
      %s69 = sadd.s32 %s68, 1
      %s70 = scalar_select %p67, %s68, %s69
      %p73 = pneg %p67
      %p74 = scmp.eq.s32.totalorder %s18, 9
      %p75 = por %p73, %p74
      %p76 = scmp.ne.s32.totalorder %s68, %s71
      %p77 = scmp.eq.s32.totalorder %s18, 0
      %p78 = por %p76, %p77
      %p79 = scmp.ne.s32.totalorder %s68, %s71
      %p80 = scmp.eq.s32.totalorder %s23, 9
      %p81 = por %p79, %p80
      %p82 = scmp.ne.s32.totalorder %s71, %s72
      %p83 = scmp.eq.s32.totalorder %s23, 0
      %p84 = por %p82, %p83
      %p85 = scmp.ne.s32.totalorder %s71, %s72
      %p86 = scmp.eq.s32.totalorder %s24, 9
      %p87 = por %p85, %p86
      %p89 = scmp.ne.s32.totalorder %s72, %s88
      %p90 = scmp.eq.s32.totalorder %s24, 0
      %p91 = por %p89, %p90
      %s92 = ssub.s32 %s25, %s37
      %p93 = scmp.eq.s32.totalorder %s92, 0
      %s95 = sadd.s32 %s94, 1
      %s96 = scalar_select %p93, %s94, %s95
      %p99 = pneg %p93
      %p100 = scmp.eq.s32.totalorder %s18, 9
      %p101 = por %p99, %p100
      %p102 = scmp.ne.s32.totalorder %s94, %s97
      %p103 = scmp.eq.s32.totalorder %s18, 0
      %p104 = por %p102, %p103
      %p105 = scmp.ne.s32.totalorder %s94, %s97
      %p106 = scmp.eq.s32.totalorder %s23, 9
      %p107 = por %p105, %p106
      %p108 = scmp.ne.s32.totalorder %s97, %s98
      %p109 = scmp.eq.s32.totalorder %s23, 0
      %p110 = por %p108, %p109
      %p111 = scmp.ne.s32.totalorder %s97, %s98
      %p112 = scmp.eq.s32.totalorder %s24, 9
      %p113 = por %p111, %p112
      %p115 = scmp.ne.s32.totalorder %s98, %s114
      %p116 = scmp.eq.s32.totalorder %s24, 0
      %p117 = por %p115, %p116
      %s118 = ssub.s32 %s25, %s37
      %p119 = scmp.eq.s32.totalorder %s118, 0
      %s121 = sadd.s32 %s120, 1
      %s122 = scalar_select %p119, %s120, %s121
      %p125 = pneg %p119
      %p126 = scmp.eq.s32.totalorder %s18, 9
      %p127 = por %p125, %p126
      %p128 = scmp.ne.s32.totalorder %s120, %s123
      %p129 = scmp.eq.s32.totalorder %s18, 0
      %p130 = por %p128, %p129
      %p131 = scmp.ne.s32.totalorder %s120, %s123
      %p132 = scmp.eq.s32.totalorder %s23, 9
      %p133 = por %p131, %p132
      %p134 = scmp.ne.s32.totalorder %s123, %s124
      %p135 = scmp.eq.s32.totalorder %s23, 0
      %p136 = por %p134, %p135
      %p137 = scmp.ne.s32.totalorder %s123, %s124
      %p138 = scmp.eq.s32.totalorder %s24, 9
      %p139 = por %p137, %p138
      %p141 = scmp.ne.s32.totalorder %s124, %s140
      %p142 = scmp.eq.s32.totalorder %s24, 0
      %p143 = por %p141, %p142
      %p144 = scmp.le.s32.totalorder 1, %s18
      %p145 = scmp.lt.s32.totalorder %s18, 11
      %p146 = pnand %p144, %p145
      %p147 = pneg %p146
      // Predicated region
      $region9: #{linear_model_forward.1} parent=5 // pred_check
        _
      $region10: #{linear_model_forward.1} parent=5 // pred_check_branch
        %149 = sbr.rel (%p146) target = $region12
      $region11: #{linear_model_forward.1} parent=5 // pred_region
        %s150 = ssub.s32 %s18, 1
      $region12: #{linear_model_forward.1} parent=5 // pred_fallthru
        _
      %p151 = scmp.lt.s32.totalorder %s18, 10
      // Predicated region
      $region13: #{linear_model_forward.1} parent=5 // pred_check
        %p152 = pneg %p151
      $region14: #{linear_model_forward.1} parent=5 // pred_check_branch
        %154 = sbr.rel (%p152) target = $region16
      $region15: #{linear_model_forward.1} parent=5 // pred_region
        // Predicated region
        $region17: #{linear_model_forward.1} parent=15 // pred_check
          %p155 = pneg %p50
        $region18: #{linear_model_forward.1} parent=15 // pred_check_branch
          %157 = sbr.rel (%p155) target = $region20
        $region19: #{linear_model_forward.1} parent=15 // pred_region
          %s158 = smul.u32 8, %s26
          %p159 = scmp.lt.s32.totalorder %s158, 15
          %s160 = scalar_select %p159, %s158, 15
          %s161 = scalar_lea.vmem %s0, %s160
          %s162 = smul.u32 8, %s26
        $region20: #{linear_model_forward.1} parent=15 // pred_fallthru
          _
        // Predicated region
        $region21: #{linear_model_forward.1} parent=15 // pred_check
          %p163 = pneg %p78
        $region22: #{linear_model_forward.1} parent=15 // pred_check_branch
          %165 = sbr.rel (%p163) target = $region24
        $region23: #{linear_model_forward.1} parent=15 // pred_region
          %s166 = sand.u32 %s68, 1
          %s167 = scalar_lea.sflag [#allocation4], %s166
          %s168 = sand.u32 %s68, 1
          %s169 = smul.addr %s168, 512
          %s170 = scalar_lea.vmem [#allocation3], %s169
          %s171 = smul.u32 128, %s26
          %s173 = ssub.s32 8192, 8192
          %174 = vsyncadd %s167, %s173
          %s175 = smul.addr %s171, 5
          %s176 = sadd.s32 %s25, %s175
          %s177 = smul.addr %s176, 64
          %s178 = scalar_lea.hbm %s1, %s177
          %s179 = sshll.u32 %s170, 4
          %s180 = int_to_ptr.vmem [resolvable:$true] %s179
          %185 = dma.hbm_to_vmem [thread:$0]  %s178, 8192, %s180, %s167, 320, 64, 4
        $region24: #{linear_model_forward.1} parent=15 // pred_fallthru
          _
        // Predicated region
        $region25: #{linear_model_forward.1} parent=15 // pred_check
          %p186 = pneg %p104
        $region26: #{linear_model_forward.1} parent=15 // pred_check_branch
          %188 = sbr.rel (%p186) target = $region28
        $region27: #{linear_model_forward.1} parent=15 // pred_region
          %s189 = sand.u32 %s94, 1
          %s190 = scalar_lea.sflag [#allocation7], %s189
          %s191 = sand.u32 %s94, 1
          %s192 = scalar_lea.vmem [#allocation6], %s191
          %s194 = ssub.s32 16, 16
          %195 = vsyncadd %s190, %s194
          %s196 = smul.addr %s25, 16
          %s197 = scalar_lea.hbm %s2, %s196
          %s199 = sshll.u32 %s192, 4
          %s200 = int_to_ptr.vmem [resolvable:$true] %s199
          %202 = dma.hbm_to_vmem [thread:$0]  %s197, 16, %s200, %s190
        $region28: #{linear_model_forward.1} parent=15 // pred_fallthru
          _
      $region16: #{linear_model_forward.1} parent=5 // pred_fallthru
        _
      %p203 = scmp.le.s32.totalorder 1, %s18
      %p204 = scmp.lt.s32.totalorder %s18, 11
      %p205 = pnand %p203, %p204
      %p206 = pneg %p205
      // Predicated region
      $region29: #{linear_model_forward.1} parent=5 // pred_check
        _
      $region30: #{linear_model_forward.1} parent=5 // pred_check_branch
        %208 = sbr.rel (%p205) target = $region32
      $region31: #{linear_model_forward.1} parent=5 // pred_region
        %s209 = ssub.s32 %s18, 1
        %s210 = sand.u32 %s71, 1
        %s211 = scalar_lea.sflag [#allocation4], %s210
        %s212 = sand.u32 %s71, 1
        %s213 = smul.addr %s212, 512
        %s214 = scalar_lea.vmem [#allocation3], %s213
        // Predicated region
        $region33: #{linear_model_forward.1} parent=31 // pred_check
          %p215 = pneg %p84
        $region34: #{linear_model_forward.1} parent=31 // pred_check_branch
          %217 = sbr.rel (%p215) target = $region36
        $region35: #{linear_model_forward.1} parent=31 // pred_region
          %218 = dma.done %s211, 8192
        $region36: #{linear_model_forward.1} parent=31 // pred_fallthru
          _
        %s219 = sand.u32 %s97, 1
        %s220 = scalar_lea.sflag [#allocation7], %s219
        %s221 = sand.u32 %s97, 1
        %s222 = scalar_lea.vmem [#allocation6], %s221
        // Predicated region
        $region37: #{linear_model_forward.1} parent=31 // pred_check
          %p223 = pneg %p110
        $region38: #{linear_model_forward.1} parent=31 // pred_check_branch
          %225 = sbr.rel (%p223) target = $region40
        $region39: #{linear_model_forward.1} parent=31 // pred_region
          %226 = dma.done %s220, 16
        $region40: #{linear_model_forward.1} parent=31 // pred_fallthru
          _
        %s227 = smul.u32 8, %s28
        %p228 = scmp.lt.s32.totalorder %s227, 15
        %s229 = scalar_select %p228, %s227, 15
        %s230 = scalar_lea.vmem %s0, %s229
        %p231 = pneg %p56
        %p232 = pneg %p53
        %s233 = sand.u32 %s71, 1
        %s234 = scalar_lea.sflag [#allocation4], %s233
        %s235 = sand.u32 %s71, 1
        %s236 = smul.addr %s235, 512
        %s237 = scalar_lea.vmem [#allocation3], %s236
        %p238 = pneg %p84
        %p239 = pneg %p81
        %s240 = sand.u32 %s97, 1
        %s241 = scalar_lea.sflag [#allocation7], %s240
        %s242 = sand.u32 %s97, 1
        %s243 = scalar_lea.vmem [#allocation6], %s242
        %p244 = pneg %p110
        %p245 = pneg %p107
        %p246 = pneg %p136
        %p247 = pneg %p133
        %s248 = sand.u32 %s123, 1
        %s249 = scalar_lea.sflag [#allocation5], %s248
        %s250 = sand.u32 %s123, 1
        %s251 = scalar_lea.vmem [#allocation8], %s250
        %s252 = smul.u32 8, %s28
        %p253 = scmp.lt.s32.totalorder %s252, 15
        %s254 = scalar_select %p253, %s252, 15
        %s255 = scalar_lea.vmem %s0, %s254
        %s256 = smul.u32 8, %s28
        %s257 = smul.u32 128, %s28
        %p258 = scmp.eq.s32.totalorder %s28, 0
        // Predicated region
        $region41: #{linear_model_forward.1} parent=31 // pred_check
          %p259 = pneg %p258
        $region42: #{linear_model_forward.1} parent=31 // pred_check_branch
          %261 = sbr.rel (%p259) target = $region44
        $region43: #{linear_model_forward.1} parent=31 // pred_region
          %262 = vst [vmem:[#allocation2] sm:$0x1] 0.0
        $region44: #{linear_model_forward.1} parent=31 // pred_fallthru
          _
        %v263 = vld [vmem:[#allocation2] sm:$0x1]
        %v264 = vld [vmem:[%s255] sm:$0xff]
        %v265 = vld [vmem:[%s214] sm:$0xf]
        %v266 = vld [vmem:[%s214 + $0x4] sm:$0xf]
        %v267 = vld [vmem:[%s214 + $0x8] sm:$0xf]
        %v268 = vld [vmem:[%s214 + $0xc] sm:$0xf]
        %v269 = vld [vmem:[%s214 + $0x10] sm:$0xf]
        %v270 = vld [vmem:[%s214 + $0x14] sm:$0xf]
        %v271 = vld [vmem:[%s214 + $0x18] sm:$0xf]
        %v272 = vld [vmem:[%s214 + $0x1c] sm:$0xf]
        %v273 = vld [vmem:[%s214 + $0x20] sm:$0xf]
        %v274 = vld [vmem:[%s214 + $0x24] sm:$0xf]
        %v275 = vld [vmem:[%s214 + $0x28] sm:$0xf]
        %v276 = vld [vmem:[%s214 + $0x2c] sm:$0xf]
        %v277 = vld [vmem:[%s214 + $0x30] sm:$0xf]
        %v278 = vld [vmem:[%s214 + $0x34] sm:$0xf]
        %v279 = vld [vmem:[%s214 + $0x38] sm:$0xf]
        %v280 = vld [vmem:[%s214 + $0x3c] sm:$0xf]
        %v281 = vld [vmem:[%s214 + $0x40] sm:$0xf]
        %v282 = vld [vmem:[%s214 + $0x44] sm:$0xf]
        %v283 = vld [vmem:[%s214 + $0x48] sm:$0xf]
        %v284 = vld [vmem:[%s214 + $0x4c] sm:$0xf]
        %v285 = vld [vmem:[%s214 + $0x50] sm:$0xf]
        %v286 = vld [vmem:[%s214 + $0x54] sm:$0xf]
        %v287 = vld [vmem:[%s214 + $0x58] sm:$0xf]
        %v288 = vld [vmem:[%s214 + $0x5c] sm:$0xf]
        %v289 = vld [vmem:[%s214 + $0x60] sm:$0xf]
        %v290 = vld [vmem:[%s214 + $0x64] sm:$0xf]
        %v291 = vld [vmem:[%s214 + $0x68] sm:$0xf]
        %v292 = vld [vmem:[%s214 + $0x6c] sm:$0xf]
        %v293 = vld [vmem:[%s214 + $0x70] sm:$0xf]
        %v294 = vld [vmem:[%s214 + $0x74] sm:$0xf]
        %v295 = vld [vmem:[%s214 + $0x78] sm:$0xf]
        %v296 = vld [vmem:[%s214 + $0x7c] sm:$0xf]
        %v297 = vld [vmem:[%s214 + $0x80] sm:$0xf]
        %v298 = vld [vmem:[%s214 + $0x84] sm:$0xf]
        %v299 = vld [vmem:[%s214 + $0x88] sm:$0xf]
        %v300 = vld [vmem:[%s214 + $0x8c] sm:$0xf]
        %v301 = vld [vmem:[%s214 + $0x90] sm:$0xf]
        %v302 = vld [vmem:[%s214 + $0x94] sm:$0xf]
        %v303 = vld [vmem:[%s214 + $0x98] sm:$0xf]
        %v304 = vld [vmem:[%s214 + $0x9c] sm:$0xf]
        %v305 = vld [vmem:[%s214 + $0xa0] sm:$0xf]
        %v306 = vld [vmem:[%s214 + $0xa4] sm:$0xf]
        %v307 = vld [vmem:[%s214 + $0xa8] sm:$0xf]
        %v308 = vld [vmem:[%s214 + $0xac] sm:$0xf]
        %v309 = vld [vmem:[%s214 + $0xb0] sm:$0xf]
        %v310 = vld [vmem:[%s214 + $0xb4] sm:$0xf]
        %v311 = vld [vmem:[%s214 + $0xb8] sm:$0xf]
        %v312 = vld [vmem:[%s214 + $0xbc] sm:$0xf]
        %v313 = vld [vmem:[%s214 + $0xc0] sm:$0xf]
        %v314 = vld [vmem:[%s214 + $0xc4] sm:$0xf]
        %v315 = vld [vmem:[%s214 + $0xc8] sm:$0xf]
        %v316 = vld [vmem:[%s214 + $0xcc] sm:$0xf]
        %v317 = vld [vmem:[%s214 + $0xd0] sm:$0xf]
        %v318 = vld [vmem:[%s214 + $0xd4] sm:$0xf]
        %v319 = vld [vmem:[%s214 + $0xd8] sm:$0xf]
        %v320 = vld [vmem:[%s214 + $0xdc] sm:$0xf]
        %v321 = vld [vmem:[%s214 + $0xe0] sm:$0xf]
        %v322 = vld [vmem:[%s214 + $0xe4] sm:$0xf]
        %v323 = vld [vmem:[%s214 + $0xe8] sm:$0xf]
        %v324 = vld [vmem:[%s214 + $0xec] sm:$0xf]
        %v325 = vld [vmem:[%s214 + $0xf0] sm:$0xf]
        %v326 = vld [vmem:[%s214 + $0xf4] sm:$0xf]
        %v327 = vld [vmem:[%s214 + $0xf8] sm:$0xf]
        %v328 = vld [vmem:[%s214 + $0xfc] sm:$0xf]
        %v329 = vld [vmem:[%s214 + $0x100] sm:$0xf]
        %v330 = vld [vmem:[%s214 + $0x104] sm:$0xf]
        %v331 = vld [vmem:[%s214 + $0x108] sm:$0xf]
        %v332 = vld [vmem:[%s214 + $0x10c] sm:$0xf]
        %v333 = vld [vmem:[%s214 + $0x110] sm:$0xf]
        %v334 = vld [vmem:[%s214 + $0x114] sm:$0xf]
        %v335 = vld [vmem:[%s214 + $0x118] sm:$0xf]
        %v336 = vld [vmem:[%s214 + $0x11c] sm:$0xf]
        %v337 = vld [vmem:[%s214 + $0x120] sm:$0xf]
        %v338 = vld [vmem:[%s214 + $0x124] sm:$0xf]
        %v339 = vld [vmem:[%s214 + $0x128] sm:$0xf]
        %v340 = vld [vmem:[%s214 + $0x12c] sm:$0xf]
        %v341 = vld [vmem:[%s214 + $0x130] sm:$0xf]
        %v342 = vld [vmem:[%s214 + $0x134] sm:$0xf]
        %v343 = vld [vmem:[%s214 + $0x138] sm:$0xf]
        %v344 = vld [vmem:[%s214 + $0x13c] sm:$0xf]
        %v345 = vld [vmem:[%s214 + $0x140] sm:$0xf]
        %v346 = vld [vmem:[%s214 + $0x144] sm:$0xf]
        %v347 = vld [vmem:[%s214 + $0x148] sm:$0xf]
        %v348 = vld [vmem:[%s214 + $0x14c] sm:$0xf]
        %v349 = vld [vmem:[%s214 + $0x150] sm:$0xf]
        %v350 = vld [vmem:[%s214 + $0x154] sm:$0xf]
        %v351 = vld [vmem:[%s214 + $0x158] sm:$0xf]
        %v352 = vld [vmem:[%s214 + $0x15c] sm:$0xf]
        %v353 = vld [vmem:[%s214 + $0x160] sm:$0xf]
        %v354 = vld [vmem:[%s214 + $0x164] sm:$0xf]
        %v355 = vld [vmem:[%s214 + $0x168] sm:$0xf]
        %v356 = vld [vmem:[%s214 + $0x16c] sm:$0xf]
        %v357 = vld [vmem:[%s214 + $0x170] sm:$0xf]
        %v358 = vld [vmem:[%s214 + $0x174] sm:$0xf]
        %v359 = vld [vmem:[%s214 + $0x178] sm:$0xf]
        %v360 = vld [vmem:[%s214 + $0x17c] sm:$0xf]
        %v361 = vld [vmem:[%s214 + $0x180] sm:$0xf]
        %v362 = vld [vmem:[%s214 + $0x184] sm:$0xf]
        %v363 = vld [vmem:[%s214 + $0x188] sm:$0xf]
        %v364 = vld [vmem:[%s214 + $0x18c] sm:$0xf]
        %v365 = vld [vmem:[%s214 + $0x190] sm:$0xf]
        %v366 = vld [vmem:[%s214 + $0x194] sm:$0xf]
        %v367 = vld [vmem:[%s214 + $0x198] sm:$0xf]
        %v368 = vld [vmem:[%s214 + $0x19c] sm:$0xf]
        %v369 = vld [vmem:[%s214 + $0x1a0] sm:$0xf]
        %v370 = vld [vmem:[%s214 + $0x1a4] sm:$0xf]
        %v371 = vld [vmem:[%s214 + $0x1a8] sm:$0xf]
        %v372 = vld [vmem:[%s214 + $0x1ac] sm:$0xf]
        %v373 = vld [vmem:[%s214 + $0x1b0] sm:$0xf]
        %v374 = vld [vmem:[%s214 + $0x1b4] sm:$0xf]
        %v375 = vld [vmem:[%s214 + $0x1b8] sm:$0xf]
        %v376 = vld [vmem:[%s214 + $0x1bc] sm:$0xf]
        %v377 = vld [vmem:[%s214 + $0x1c0] sm:$0xf]
        %v378 = vld [vmem:[%s214 + $0x1c4] sm:$0xf]
        %v379 = vld [vmem:[%s214 + $0x1c8] sm:$0xf]
        %v380 = vld [vmem:[%s214 + $0x1cc] sm:$0xf]
        %v381 = vld [vmem:[%s214 + $0x1d0] sm:$0xf]
        %v382 = vld [vmem:[%s214 + $0x1d4] sm:$0xf]
        %v383 = vld [vmem:[%s214 + $0x1d8] sm:$0xf]
        %v384 = vld [vmem:[%s214 + $0x1dc] sm:$0xf]
        %v385 = vld [vmem:[%s214 + $0x1e0] sm:$0xf]
        %v386 = vld [vmem:[%s214 + $0x1e4] sm:$0xf]
        %v387 = vld [vmem:[%s214 + $0x1e8] sm:$0xf]
        %v388 = vld [vmem:[%s214 + $0x1ec] sm:$0xf]
        %v389 = vld [vmem:[%s214 + $0x1f0] sm:$0xf]
        %v390 = vld [vmem:[%s214 + $0x1f4] sm:$0xf]
        %v391 = vld [vmem:[%s214 + $0x1f8] sm:$0xf]
        %v392 = vld [vmem:[%s214 + $0x1fc] sm:$0xf]
        %v393 = vunpack.c.l.bf16 %v265
        %v394 = vunpack.c.l.bf16 %v266
        %v395 = vunpack.c.l.bf16 %v267
        %v396 = vunpack.c.l.bf16 %v268
        %v397 = vunpack.c.l.bf16 %v269
        %v398 = vunpack.c.l.bf16 %v270
        %v399 = vunpack.c.l.bf16 %v271
        %v400 = vunpack.c.l.bf16 %v272
        %v401 = vunpack.c.l.bf16 %v273
        %v402 = vunpack.c.l.bf16 %v274
        %v403 = vunpack.c.l.bf16 %v275
        %v404 = vunpack.c.l.bf16 %v276
        %v405 = vunpack.c.l.bf16 %v277
        %v406 = vunpack.c.l.bf16 %v278
        %v407 = vunpack.c.l.bf16 %v279
        %v408 = vunpack.c.l.bf16 %v280
        %v409 = vunpack.c.l.bf16 %v281
        %v410 = vunpack.c.l.bf16 %v282
        %v411 = vunpack.c.l.bf16 %v283
        %v412 = vunpack.c.l.bf16 %v284
        %v413 = vunpack.c.l.bf16 %v285
        %v414 = vunpack.c.l.bf16 %v286
        %v415 = vunpack.c.l.bf16 %v287
        %v416 = vunpack.c.l.bf16 %v288
        %v417 = vunpack.c.l.bf16 %v289
        %v418 = vunpack.c.l.bf16 %v290
        %v419 = vunpack.c.l.bf16 %v291
        %v420 = vunpack.c.l.bf16 %v292
        %v421 = vunpack.c.l.bf16 %v293
        %v422 = vunpack.c.l.bf16 %v294
        %v423 = vunpack.c.l.bf16 %v295
        %v424 = vunpack.c.l.bf16 %v296
        %v425 = vunpack.c.l.bf16 %v297
        %v426 = vunpack.c.l.bf16 %v298
        %v427 = vunpack.c.l.bf16 %v299
        %v428 = vunpack.c.l.bf16 %v300
        %v429 = vunpack.c.l.bf16 %v301
        %v430 = vunpack.c.l.bf16 %v302
        %v431 = vunpack.c.l.bf16 %v303
        %v432 = vunpack.c.l.bf16 %v304
        %v433 = vunpack.c.l.bf16 %v305
        %v434 = vunpack.c.l.bf16 %v306
        %v435 = vunpack.c.l.bf16 %v307
        %v436 = vunpack.c.l.bf16 %v308
        %v437 = vunpack.c.l.bf16 %v309
        %v438 = vunpack.c.l.bf16 %v310
        %v439 = vunpack.c.l.bf16 %v311
        %v440 = vunpack.c.l.bf16 %v312
        %v441 = vunpack.c.l.bf16 %v313
        %v442 = vunpack.c.l.bf16 %v314
        %v443 = vunpack.c.l.bf16 %v315
        %v444 = vunpack.c.l.bf16 %v316
        %v445 = vunpack.c.l.bf16 %v317
        %v446 = vunpack.c.l.bf16 %v318
        %v447 = vunpack.c.l.bf16 %v319
        %v448 = vunpack.c.l.bf16 %v320
        %v449 = vunpack.c.l.bf16 %v321
        %v450 = vunpack.c.l.bf16 %v322
        %v451 = vunpack.c.l.bf16 %v323
        %v452 = vunpack.c.l.bf16 %v324
        %v453 = vunpack.c.l.bf16 %v325
        %v454 = vunpack.c.l.bf16 %v326
        %v455 = vunpack.c.l.bf16 %v327
        %v456 = vunpack.c.l.bf16 %v328
        %v457 = vunpack.c.l.bf16 %v329
        %v458 = vunpack.c.l.bf16 %v330
        %v459 = vunpack.c.l.bf16 %v331
        %v460 = vunpack.c.l.bf16 %v332
        %v461 = vunpack.c.l.bf16 %v333
        %v462 = vunpack.c.l.bf16 %v334
        %v463 = vunpack.c.l.bf16 %v335
        %v464 = vunpack.c.l.bf16 %v336
        %v465 = vunpack.c.l.bf16 %v337
        %v466 = vunpack.c.l.bf16 %v338
        %v467 = vunpack.c.l.bf16 %v339
        %v468 = vunpack.c.l.bf16 %v340
        %v469 = vunpack.c.l.bf16 %v341
        %v470 = vunpack.c.l.bf16 %v342
        %v471 = vunpack.c.l.bf16 %v343
        %v472 = vunpack.c.l.bf16 %v344
        %v473 = vunpack.c.l.bf16 %v345
        %v474 = vunpack.c.l.bf16 %v346
        %v475 = vunpack.c.l.bf16 %v347
        %v476 = vunpack.c.l.bf16 %v348
        %v477 = vunpack.c.l.bf16 %v349
        %v478 = vunpack.c.l.bf16 %v350
        %v479 = vunpack.c.l.bf16 %v351
        %v480 = vunpack.c.l.bf16 %v352
        %v481 = vunpack.c.l.bf16 %v353
        %v482 = vunpack.c.l.bf16 %v354
        %v483 = vunpack.c.l.bf16 %v355
        %v484 = vunpack.c.l.bf16 %v356
        %v485 = vunpack.c.l.bf16 %v357
        %v486 = vunpack.c.l.bf16 %v358
        %v487 = vunpack.c.l.bf16 %v359
        %v488 = vunpack.c.l.bf16 %v360
        %v489 = vunpack.c.l.bf16 %v361
        %v490 = vunpack.c.l.bf16 %v362
        %v491 = vunpack.c.l.bf16 %v363
        %v492 = vunpack.c.l.bf16 %v364
        %v493 = vunpack.c.l.bf16 %v365
        %v494 = vunpack.c.l.bf16 %v366
        %v495 = vunpack.c.l.bf16 %v367
        %v496 = vunpack.c.l.bf16 %v368
        %v497 = vunpack.c.l.bf16 %v369
        %v498 = vunpack.c.l.bf16 %v370
        %v499 = vunpack.c.l.bf16 %v371
        %v500 = vunpack.c.l.bf16 %v372
        %v501 = vunpack.c.l.bf16 %v373
        %v502 = vunpack.c.l.bf16 %v374
        %v503 = vunpack.c.l.bf16 %v375
        %v504 = vunpack.c.l.bf16 %v376
        %v505 = vunpack.c.l.bf16 %v377
        %v506 = vunpack.c.l.bf16 %v378
        %v507 = vunpack.c.l.bf16 %v379
        %v508 = vunpack.c.l.bf16 %v380
        %v509 = vunpack.c.l.bf16 %v381
        %v510 = vunpack.c.l.bf16 %v382
        %v511 = vunpack.c.l.bf16 %v383
        %v512 = vunpack.c.l.bf16 %v384
        %v513 = vunpack.c.l.bf16 %v385
        %v514 = vunpack.c.l.bf16 %v386
        %v515 = vunpack.c.l.bf16 %v387
        %v516 = vunpack.c.l.bf16 %v388
        %v517 = vunpack.c.l.bf16 %v389
        %v518 = vunpack.c.l.bf16 %v390
        %v519 = vunpack.c.l.bf16 %v391
        %v520 = vunpack.c.l.bf16 %v392
        %v522 = vlaneseq
        %v523 = vshrl.u32 %v522, 7
        %v524 = vsub.s32 0, %v523
        %v525 = vrot.slane %v264, %v524
        %v526 = vlaneseq
        %v527 = vshrl.u32 %v526, 7
        %v528 = vsub.s32 1, %v527
        %v529 = vrot.slane %v264, %v528
        %v530 = vlaneseq
        %v531 = vshrl.u32 %v530, 7
        %v532 = vsub.s32 2, %v531
        %v533 = vrot.slane %v264, %v532
        %v534 = vlaneseq
        %v535 = vshrl.u32 %v534, 7
        %v536 = vsub.s32 3, %v535
        %v537 = vrot.slane %v264, %v536
        %v538 = vlaneseq
        %v539 = vshrl.u32 %v538, 7
        %v540 = vsub.s32 4, %v539
        %v541 = vrot.slane %v264, %v540
        %v542 = vlaneseq
        %v543 = vshrl.u32 %v542, 7
        %v544 = vsub.s32 5, %v543
        %v545 = vrot.slane %v264, %v544
        %v546 = vlaneseq
        %v547 = vshrl.u32 %v546, 7
        %v548 = vsub.s32 6, %v547
        %v549 = vrot.slane %v264, %v548
        %v550 = vlaneseq
        %v551 = vshrl.u32 %v550, 7
        %v552 = vsub.s32 7, %v551
        %v553 = vrot.slane %v264, %v552
        %562 = vmatprep.subr.mxu0 0.0
        %563 = vmatpush1.msra.mxu0 %v408
        %564 = vmatprep.subr.mxu0 0.0
        %565 = vmatpush1.msra.mxu0 %v407
        %566 = vmatprep.subr.mxu0 0.0
        %567 = vmatpush1.msra.mxu0 %v406
        %568 = vmatprep.subr.mxu0 0.0
        %569 = vmatpush1.msra.mxu0 %v405
        %570 = vmatprep.subr.mxu0 0.0
        %571 = vmatpush1.msra.mxu0 %v404
        %572 = vmatprep.subr.mxu0 0.0
        %573 = vmatpush1.msra.mxu0 %v403
        %574 = vmatprep.subr.mxu0 0.0
        %575 = vmatpush1.msra.mxu0 %v402
        %576 = vmatprep.subr.mxu0 0.0
        %577 = vmatpush1.msra.mxu0 %v401
        %578 = vmatprep.subr.mxu0 0.0
        %579 = vmatpush1.msra.mxu0 %v400
        %580 = vmatprep.subr.mxu0 0.0
        %581 = vmatpush1.msra.mxu0 %v399
        %582 = vmatprep.subr.mxu0 0.0
        %583 = vmatpush1.msra.mxu0 %v398
        %584 = vmatprep.subr.mxu0 0.0
        %585 = vmatpush1.msra.mxu0 %v397
        %586 = vmatprep.subr.mxu0 0.0
        %587 = vmatpush1.msra.mxu0 %v396
        %588 = vmatprep.subr.mxu0 0.0
        %589 = vmatpush1.msra.mxu0 %v395
        %590 = vmatprep.subr.mxu0 0.0
        %591 = vmatpush1.msra.mxu0 %v394
        %592 = vmatprep.subr.mxu0 0.0
        %593 = vmatpush1.msra.mxu0 %v393
        %594 = vmatprep.subr.mxu0 0.0
        %595 = vmatpush2.msra.mxu0 %v424
        %596 = vmatprep.subr.mxu0 0.0
        %597 = vmatpush2.msra.mxu0 %v423
        %598 = vmatprep.subr.mxu0 0.0
        %599 = vmatpush2.msra.mxu0 %v422
        %600 = vmatprep.subr.mxu0 0.0
        %601 = vmatpush2.msra.mxu0 %v421
        %602 = vmatprep.subr.mxu0 0.0
        %603 = vmatpush2.msra.mxu0 %v420
        %604 = vmatprep.subr.mxu0 0.0
        %605 = vmatpush2.msra.mxu0 %v419
        %606 = vmatprep.subr.mxu0 0.0
        %607 = vmatpush2.msra.mxu0 %v418
        %608 = vmatprep.subr.mxu0 0.0
        %609 = vmatpush2.msra.mxu0 %v417
        %610 = vmatprep.subr.mxu0 0.0
        %611 = vmatpush2.msra.mxu0 %v416
        %612 = vmatprep.subr.mxu0 0.0
        %613 = vmatpush2.msra.mxu0 %v415
        %614 = vmatprep.subr.mxu0 0.0
        %615 = vmatpush2.msra.mxu0 %v414
        %616 = vmatprep.subr.mxu0 0.0
        %617 = vmatpush2.msra.mxu0 %v413
        %618 = vmatprep.subr.mxu0 0.0
        %619 = vmatpush2.msra.mxu0 %v412
        %620 = vmatprep.subr.mxu0 0.0
        %621 = vmatpush2.msra.mxu0 %v411
        %622 = vmatprep.subr.mxu0 0.0
        %623 = vmatpush2.msra.mxu0 %v410
        %624 = vmatprep.subr.mxu0 0.0
        %625 = vmatpush2.msra.mxu0 %v409
        %626 = vmatprep.mubr.f32.mxu0 %v529
        %627 = vmatmul.mubr.f32.gmra.mxu0 %v525
        %v628 = vpop.f32.mrf.mxu0
        %v629 = vadd.f32 0.0, %v628
        %v630 = vpop.f32.mrf.mxu0
        %631 = vdwg.mxu0
        %632 = vmatprep.subr.mxu0 0.0
        %633 = vmatpush1.msra.mxu0 %v440
        %634 = vmatprep.subr.mxu0 0.0
        %635 = vmatpush1.msra.mxu0 %v439
        %636 = vmatprep.subr.mxu0 0.0
        %637 = vmatpush1.msra.mxu0 %v438
        %638 = vmatprep.subr.mxu0 0.0
        %639 = vmatpush1.msra.mxu0 %v437
        %640 = vmatprep.subr.mxu0 0.0
        %641 = vmatpush1.msra.mxu0 %v436
        %642 = vmatprep.subr.mxu0 0.0
        %643 = vmatpush1.msra.mxu0 %v435
        %644 = vmatprep.subr.mxu0 0.0
        %645 = vmatpush1.msra.mxu0 %v434
        %646 = vmatprep.subr.mxu0 0.0
        %647 = vmatpush1.msra.mxu0 %v433
        %648 = vmatprep.subr.mxu0 0.0
        %649 = vmatpush1.msra.mxu0 %v432
        %650 = vmatprep.subr.mxu0 0.0
        %651 = vmatpush1.msra.mxu0 %v431
        %652 = vmatprep.subr.mxu0 0.0
        %653 = vmatpush1.msra.mxu0 %v430
        %654 = vmatprep.subr.mxu0 0.0
        %655 = vmatpush1.msra.mxu0 %v429
        %656 = vmatprep.subr.mxu0 0.0
        %657 = vmatpush1.msra.mxu0 %v428
        %658 = vmatprep.subr.mxu0 0.0
        %659 = vmatpush1.msra.mxu0 %v427
        %660 = vmatprep.subr.mxu0 0.0
        %661 = vmatpush1.msra.mxu0 %v426
        %662 = vmatprep.subr.mxu0 0.0
        %663 = vmatpush1.msra.mxu0 %v425
        %664 = vmatprep.subr.mxu0 0.0
        %665 = vmatpush2.msra.mxu0 %v456
        %666 = vmatprep.subr.mxu0 0.0
        %667 = vmatpush2.msra.mxu0 %v455
        %668 = vmatprep.subr.mxu0 0.0
        %669 = vmatpush2.msra.mxu0 %v454
        %670 = vmatprep.subr.mxu0 0.0
        %671 = vmatpush2.msra.mxu0 %v453
        %672 = vmatprep.subr.mxu0 0.0
        %673 = vmatpush2.msra.mxu0 %v452
        %674 = vmatprep.subr.mxu0 0.0
        %675 = vmatpush2.msra.mxu0 %v451
        %676 = vmatprep.subr.mxu0 0.0
        %677 = vmatpush2.msra.mxu0 %v450
        %678 = vmatprep.subr.mxu0 0.0
        %679 = vmatpush2.msra.mxu0 %v449
        %680 = vmatprep.subr.mxu0 0.0
        %681 = vmatpush2.msra.mxu0 %v448
        %682 = vmatprep.subr.mxu0 0.0
        %683 = vmatpush2.msra.mxu0 %v447
        %684 = vmatprep.subr.mxu0 0.0
        %685 = vmatpush2.msra.mxu0 %v446
        %686 = vmatprep.subr.mxu0 0.0
        %687 = vmatpush2.msra.mxu0 %v445
        %688 = vmatprep.subr.mxu0 0.0
        %689 = vmatpush2.msra.mxu0 %v444
        %690 = vmatprep.subr.mxu0 0.0
        %691 = vmatpush2.msra.mxu0 %v443
        %692 = vmatprep.subr.mxu0 0.0
        %693 = vmatpush2.msra.mxu0 %v442
        %694 = vmatprep.subr.mxu0 0.0
        %695 = vmatpush2.msra.mxu0 %v441
        %696 = vmatprep.mubr.f32.mxu0 %v537
        %697 = vmatmul.mubr.f32.gmra.mxu0 %v533
        %v698 = vpop.f32.mrf.mxu0
        %v699 = vadd.f32 %v629, %v698
        %v700 = vpop.f32.mrf.mxu0
        %701 = vdwg.mxu0
        %702 = vmatprep.subr.mxu0 0.0
        %703 = vmatpush1.msra.mxu0 %v472
        %704 = vmatprep.subr.mxu0 0.0
        %705 = vmatpush1.msra.mxu0 %v471
        %706 = vmatprep.subr.mxu0 0.0
        %707 = vmatpush1.msra.mxu0 %v470
        %708 = vmatprep.subr.mxu0 0.0
        %709 = vmatpush1.msra.mxu0 %v469
        %710 = vmatprep.subr.mxu0 0.0
        %711 = vmatpush1.msra.mxu0 %v468
        %712 = vmatprep.subr.mxu0 0.0
        %713 = vmatpush1.msra.mxu0 %v467
        %714 = vmatprep.subr.mxu0 0.0
        %715 = vmatpush1.msra.mxu0 %v466
        %716 = vmatprep.subr.mxu0 0.0
        %717 = vmatpush1.msra.mxu0 %v465
        %718 = vmatprep.subr.mxu0 0.0
        %719 = vmatpush1.msra.mxu0 %v464
        %720 = vmatprep.subr.mxu0 0.0
        %721 = vmatpush1.msra.mxu0 %v463
        %722 = vmatprep.subr.mxu0 0.0
        %723 = vmatpush1.msra.mxu0 %v462
        %724 = vmatprep.subr.mxu0 0.0
        %725 = vmatpush1.msra.mxu0 %v461
        %726 = vmatprep.subr.mxu0 0.0
        %727 = vmatpush1.msra.mxu0 %v460
        %728 = vmatprep.subr.mxu0 0.0
        %729 = vmatpush1.msra.mxu0 %v459
        %730 = vmatprep.subr.mxu0 0.0
        %731 = vmatpush1.msra.mxu0 %v458
        %732 = vmatprep.subr.mxu0 0.0
        %733 = vmatpush1.msra.mxu0 %v457
        %734 = vmatprep.subr.mxu0 0.0
        %735 = vmatpush2.msra.mxu0 %v488
        %736 = vmatprep.subr.mxu0 0.0
        %737 = vmatpush2.msra.mxu0 %v487
        %738 = vmatprep.subr.mxu0 0.0
        %739 = vmatpush2.msra.mxu0 %v486
        %740 = vmatprep.subr.mxu0 0.0
        %741 = vmatpush2.msra.mxu0 %v485
        %742 = vmatprep.subr.mxu0 0.0
        %743 = vmatpush2.msra.mxu0 %v484
        %744 = vmatprep.subr.mxu0 0.0
        %745 = vmatpush2.msra.mxu0 %v483
        %746 = vmatprep.subr.mxu0 0.0
        %747 = vmatpush2.msra.mxu0 %v482
        %748 = vmatprep.subr.mxu0 0.0
        %749 = vmatpush2.msra.mxu0 %v481
        %750 = vmatprep.subr.mxu0 0.0
        %751 = vmatpush2.msra.mxu0 %v480
        %752 = vmatprep.subr.mxu0 0.0
        %753 = vmatpush2.msra.mxu0 %v479
        %754 = vmatprep.subr.mxu0 0.0
        %755 = vmatpush2.msra.mxu0 %v478
        %756 = vmatprep.subr.mxu0 0.0
        %757 = vmatpush2.msra.mxu0 %v477
        %758 = vmatprep.subr.mxu0 0.0
        %759 = vmatpush2.msra.mxu0 %v476
        %760 = vmatprep.subr.mxu0 0.0
        %761 = vmatpush2.msra.mxu0 %v475
        %762 = vmatprep.subr.mxu0 0.0
        %763 = vmatpush2.msra.mxu0 %v474
        %764 = vmatprep.subr.mxu0 0.0
        %765 = vmatpush2.msra.mxu0 %v473
        %766 = vmatprep.mubr.f32.mxu0 %v545
        %767 = vmatmul.mubr.f32.gmra.mxu0 %v541
        %v768 = vpop.f32.mrf.mxu0
        %v769 = vadd.f32 %v699, %v768
        %v770 = vpop.f32.mrf.mxu0
        %771 = vdwg.mxu0
        %772 = vmatprep.subr.mxu0 0.0
        %773 = vmatpush1.msra.mxu0 %v504
        %774 = vmatprep.subr.mxu0 0.0
        %775 = vmatpush1.msra.mxu0 %v503
        %776 = vmatprep.subr.mxu0 0.0
        %777 = vmatpush1.msra.mxu0 %v502
        %778 = vmatprep.subr.mxu0 0.0
        %779 = vmatpush1.msra.mxu0 %v501
        %780 = vmatprep.subr.mxu0 0.0
        %781 = vmatpush1.msra.mxu0 %v500
        %782 = vmatprep.subr.mxu0 0.0
        %783 = vmatpush1.msra.mxu0 %v499
        %784 = vmatprep.subr.mxu0 0.0
        %785 = vmatpush1.msra.mxu0 %v498
        %786 = vmatprep.subr.mxu0 0.0
        %787 = vmatpush1.msra.mxu0 %v497
        %788 = vmatprep.subr.mxu0 0.0
        %789 = vmatpush1.msra.mxu0 %v496
        %790 = vmatprep.subr.mxu0 0.0
        %791 = vmatpush1.msra.mxu0 %v495
        %792 = vmatprep.subr.mxu0 0.0
        %793 = vmatpush1.msra.mxu0 %v494
        %794 = vmatprep.subr.mxu0 0.0
        %795 = vmatpush1.msra.mxu0 %v493
        %796 = vmatprep.subr.mxu0 0.0
        %797 = vmatpush1.msra.mxu0 %v492
        %798 = vmatprep.subr.mxu0 0.0
        %799 = vmatpush1.msra.mxu0 %v491
        %800 = vmatprep.subr.mxu0 0.0
        %801 = vmatpush1.msra.mxu0 %v490
        %802 = vmatprep.subr.mxu0 0.0
        %803 = vmatpush1.msra.mxu0 %v489
        %804 = vmatprep.subr.mxu0 0.0
        %805 = vmatpush2.msra.mxu0 %v520
        %806 = vmatprep.subr.mxu0 0.0
        %807 = vmatpush2.msra.mxu0 %v519
        %808 = vmatprep.subr.mxu0 0.0
        %809 = vmatpush2.msra.mxu0 %v518
        %810 = vmatprep.subr.mxu0 0.0
        %811 = vmatpush2.msra.mxu0 %v517
        %812 = vmatprep.subr.mxu0 0.0
        %813 = vmatpush2.msra.mxu0 %v516
        %814 = vmatprep.subr.mxu0 0.0
        %815 = vmatpush2.msra.mxu0 %v515
        %816 = vmatprep.subr.mxu0 0.0
        %817 = vmatpush2.msra.mxu0 %v514
        %818 = vmatprep.subr.mxu0 0.0
        %819 = vmatpush2.msra.mxu0 %v513
        %820 = vmatprep.subr.mxu0 0.0
        %821 = vmatpush2.msra.mxu0 %v512
        %822 = vmatprep.subr.mxu0 0.0
        %823 = vmatpush2.msra.mxu0 %v511
        %824 = vmatprep.subr.mxu0 0.0
        %825 = vmatpush2.msra.mxu0 %v510
        %826 = vmatprep.subr.mxu0 0.0
        %827 = vmatpush2.msra.mxu0 %v509
        %828 = vmatprep.subr.mxu0 0.0
        %829 = vmatpush2.msra.mxu0 %v508
        %830 = vmatprep.subr.mxu0 0.0
        %831 = vmatpush2.msra.mxu0 %v507
        %832 = vmatprep.subr.mxu0 0.0
        %833 = vmatpush2.msra.mxu0 %v506
        %834 = vmatprep.subr.mxu0 0.0
        %835 = vmatpush2.msra.mxu0 %v505
        %836 = vmatprep.mubr.f32.mxu0 %v553
        %837 = vmatmul.mubr.f32.gmra.mxu0 %v549
        %v838 = vpop.f32.mrf.mxu0
        %v839 = vadd.f32 %v769, %v838
        %v840 = vpop.f32.mrf.mxu0
        %841 = vdwg.mxu0
        %v842 = vadd.f32 %v263, %v839
        %843 = vst [vmem:[#allocation2] sm:$0x1] %v842
        %p844 = scmp.eq.s32.totalorder %s28, 1
        // Predicated region
        $region45: #{linear_model_forward.1} parent=31 // pred_check
          %p845 = pneg %p844
        $region46: #{linear_model_forward.1} parent=31 // pred_check_branch
          %847 = sbr.rel (%p845) target = $region48
        $region47: #{linear_model_forward.1} parent=31 // pred_region
          %v848 = vld [vmem:[#allocation2] sm:$0x1]
          %v849 = vld [vmem:[%s222] sm:$0x1]
          %v850 = vadd.f32 %v848, %v849
          %851 = vst [vmem:[%s251] sm:$0x1] %v850
        $region48: #{linear_model_forward.1} parent=31 // pred_fallthru
          _
        %s852 = sand.u32 %s123, 1
        %s853 = scalar_lea.sflag [#allocation5], %s852
        %s854 = sand.u32 %s123, 1
        %s855 = scalar_lea.vmem [#allocation8], %s854
        // Predicated region
        $region49: #{linear_model_forward.1} parent=31 // pred_check
          %p856 = pneg %p133
        $region50: #{linear_model_forward.1} parent=31 // pred_check_branch
          %858 = sbr.rel (%p856) target = $region52
        $region51: #{linear_model_forward.1} parent=31 // pred_region
          %s860 = ssub.s32 16, 16
          %861 = vsyncadd %s853, %s860
          %s862 = smul.addr %s27, 16
          %s863 = scalar_lea.hbm %s3, %s862
          %s865 = sshll.u32 %s855, 4
          %s866 = int_to_ptr.vmem [resolvable:$true] %s865
          %868 = dma.vmem_to_hbm [thread:$0]  %s866, 16, %s863, %s853
        $region52: #{linear_model_forward.1} parent=31 // pred_fallthru
          _
      $region32: #{linear_model_forward.1} parent=5 // pred_fallthru
        _
      %p869 = scmp.le.s32.totalorder 2, %s18
      // Predicated region
      $region53: #{linear_model_forward.1} parent=5 // pred_check
        %p870 = pneg %p869
      $region54: #{linear_model_forward.1} parent=5 // pred_check_branch
        %872 = sbr.rel (%p870) target = $region56
      $region55: #{linear_model_forward.1} parent=5 // pred_region
        %s873 = ssub.s32 %s18, 2
        // Predicated region
        $region57: #{linear_model_forward.1} parent=55 // pred_check
          %p874 = pneg %p139
        $region58: #{linear_model_forward.1} parent=55 // pred_check_branch
          %876 = sbr.rel (%p874) target = $region60
        $region59: #{linear_model_forward.1} parent=55 // pred_region
          %s877 = sand.u32 %s124, 1
          %s878 = scalar_lea.sflag [#allocation5], %s877
          %s879 = sand.u32 %s124, 1
          %s880 = scalar_lea.vmem [#allocation8], %s879
          %881 = dma.done %s878, 16
        $region60: #{linear_model_forward.1} parent=55 // pred_fallthru
          _
      $region56: #{linear_model_forward.1} parent=5 // pred_fallthru
        _
    $region6: #{linear_model_forward.1} parent=1 // loop_footer
      %s22 = sadd.s32 1, %s18
    $region7: #{linear_model_forward.1} parent=1 // loop_footer_branch
      %17 = sbr.rel target = $region3
    $region8: #{linear_model_forward.1} parent=1 // loop_exit
      _
    %882 = vsyncpa [#allocation4], 1
    %s883 = scalar_lea.sflag [#allocation4], 1
    %884 = vsyncpa %s883, 1
    %885 = vsyncpa [#allocation7], 1
    %s886 = scalar_lea.sflag [#allocation7], 1
    %887 = vsyncpa %s886, 1
    %888 = vsyncpa [#allocation5], 1
    %s889 = scalar_lea.sflag [#allocation5], 1
    %890 = vsyncpa %s889, 1

</llo_original>
